<compile_context>
chip_gen: v7x
topology: tpu7x:2x2x1
jax: 0.10.0
libtpu: 0.0.40
codegen_flags: <defaults>
</compile_context>

<pallas_src>
import functools

import jax
import jax.numpy as jnp
from jax import lax
from jax.experimental import pallas as pl
from jax.experimental.pallas import tpu as pltpu


def _round_up(n, m):
    return ((n + m - 1) // m) * m


def _vmem_capacity_bytes():
    """Per-core VMEM capacity; conservative 64 MiB (v7x per-TC) if the query fails."""
    try:
        return int(pltpu.get_tpu_info().vmem_capacity_bytes)
    except Exception:
        return 64 << 20


# --------------------------------------------------------------------------------------
# Parameter preparation (ONCE, outside the hot path): transpose to (in, out) layout,
# split u/v halves, zero-pad d_ff to a block multiple, chunk d_ff onto a leading axis,
# cast weights to the compute dtype (biases stay f32).
# --------------------------------------------------------------------------------------
def prepare_swiglu_params(w_in_gate, b_in_gate, w_out, b_out,
                          compute_dtype=jnp.bfloat16, dff_block=512):
    """PyTorch layouts:
         w_in_gate: (2*d_ff, d_model)  [u rows first, then v rows]   b_in_gate: (2*d_ff,)
         w_out:     (d_model, d_ff)                                  b_out:     (d_model,)
       Returns (w_u, w_v, b_u, b_v, w_o, b_o):
         w_u, w_v: (n_k, d_model, dff_blk)   w_o: (n_k, dff_blk, d_model)   [compute dtype]
         b_u, b_v: (n_k, 1, dff_blk) f32     b_o: (1, d_model) f32
       Padded d_ff columns are all-zero => u = 0, silu(v)=0, contribution exactly 0.
    """
    w_in_gate = jnp.asarray(w_in_gate)
    b_in_gate = jnp.asarray(b_in_gate)
    w_out = jnp.asarray(w_out)
    b_out = jnp.asarray(b_out)

    d_model = w_in_gate.shape[1]
    d_ff = w_out.shape[1]
    dff_blk = min(_round_up(dff_block, 128), _round_up(d_ff, 128))
    d_ff_pad = _round_up(d_ff, dff_blk)
    n_k = d_ff_pad // dff_blk
    pad = d_ff_pad - d_ff

    w_u = w_in_gate[:d_ff].T          # (d_model, d_ff)
    w_v = w_in_gate[d_ff:].T          # (d_model, d_ff)
    w_o = w_out.T                     # (d_ff, d_model)
    b_u = b_in_gate[:d_ff]
    b_v = b_in_gate[d_ff:]

    if pad:
        w_u = jnp.pad(w_u, ((0, 0), (0, pad)))
        w_v = jnp.pad(w_v, ((0, 0), (0, pad)))
        w_o = jnp.pad(w_o, ((0, pad), (0, 0)))
        b_u = jnp.pad(b_u, ((0, pad),))
        b_v = jnp.pad(b_v, ((0, pad),))

    # Chunk d_ff onto a leading axis: contiguous per-block DMA, dynamic-index friendly.
    w_u = w_u.reshape(d_model, n_k, dff_blk).transpose(1, 0, 2).astype(compute_dtype)
    w_v = w_v.reshape(d_model, n_k, dff_blk).transpose(1, 0, 2).astype(compute_dtype)
    w_o = w_o.reshape(n_k, dff_blk, d_model).astype(compute_dtype)
    b_u = b_u.reshape(n_k, 1, dff_blk).astype(jnp.float32)
    b_v = b_v.reshape(n_k, 1, dff_blk).astype(jnp.float32)
    b_o = b_out.reshape(1, -1).astype(jnp.float32)
    return w_u, w_v, b_u, b_v, w_o, b_o


# --------------------------------------------------------------------------------------
# Kernels
# --------------------------------------------------------------------------------------
def _swiglu_resident_kernel(x_ref, wu_ref, wv_ref, bu_ref, bv_ref, wo_ref, bo_ref,
                            o_ref, acc_ref):
    """Weights resident in VMEM (Buffered(1), constant index); loop d_ff chunks in-kernel."""
    n_k = wu_ref.shape[0]
    x = x_ref[...].astype(wu_ref.dtype)            # cast on VPU; no wrapper HBM pass
    acc_ref[...] = jnp.zeros_like(acc_ref)

    def body(kk, carry):
        u = jnp.dot(x, wu_ref[kk], preferred_element_type=jnp.float32) + bu_ref[kk]
        v = jnp.dot(x, wv_ref[kk], preferred_element_type=jnp.float32) + bv_ref[kk]
        h = u * (v * jax.nn.sigmoid(v))            # u * silu(v), f32
        acc_ref[...] += jnp.dot(h.astype(wo_ref.dtype), wo_ref[kk],
                                preferred_element_type=jnp.float32)
        return carry

    lax.fori_loop(0, n_k, body, 0, unroll=(n_k <= 4))
    o_ref[...] = (acc_ref[...] + bo_ref[...]).astype(o_ref.dtype)


def _swiglu_streamed_kernel(x_ref, wu_ref, wv_ref, bu_ref, bv_ref, wo_ref, bo_ref,
                            o_ref, acc_ref):
    """Weight blocks streamed over a trailing 'arbitrary' d_ff grid axis (v7x path)."""
    k = pl.program_id(1)

    @pl.when(k == 0)
    def _():
        acc_ref[...] = jnp.zeros_like(acc_ref)

    x = x_ref[...].astype(wu_ref.dtype)
    u = jnp.dot(x, wu_ref[0], preferred_element_type=jnp.float32) + bu_ref[0]
    v = jnp.dot(x, wv_ref[0], preferred_element_type=jnp.float32) + bv_ref[0]
    h = u * (v * jax.nn.sigmoid(v))
    acc_ref[...] += jnp.dot(h.astype(wo_ref.dtype), wo_ref[0],
                            preferred_element_type=jnp.float32)

    @pl.when(k == pl.num_programs(1) - 1)
    def _():
        o_ref[...] = (acc_ref[...] + bo_ref[...]).astype(o_ref.dtype)


# --------------------------------------------------------------------------------------
# pallas_call builder + wrapper
# --------------------------------------------------------------------------------------
def _build_call(mode, N, d_model, n_k, dff_blk, tm, out_dtype, vmem_limit):
    n_i = pl.cdiv(N, tm)

    if mode == "resident":
        kernel = _swiglu_resident_kernel
        grid = (n_i,)
        res = dict(pipeline_mode=pl.Buffered(1))   # constant index: single buffer, one fetch
        in_specs = [
            pl.BlockSpec((tm, d_model), lambda i: (i, 0)),                      # x tile
            pl.BlockSpec((n_k, d_model, dff_blk), lambda i: (0, 0, 0), **res),  # W_u
            pl.BlockSpec((n_k, d_model, dff_blk), lambda i: (0, 0, 0), **res),  # W_v
            pl.BlockSpec((n_k, 1, dff_blk), lambda i: (0, 0, 0), **res),        # b_u
            pl.BlockSpec((n_k, 1, dff_blk), lambda i: (0, 0, 0), **res),        # b_v
            pl.BlockSpec((n_k, dff_blk, d_model), lambda i: (0, 0, 0), **res),  # W_out
            pl.BlockSpec((1, d_model), lambda i: (0, 0), **res),                # b_out
        ]
        out_specs = pl.BlockSpec((tm, d_model), lambda i: (i, 0))
        dims = ("parallel",)
    else:  # "streamed" — default double-buffered weight blocks so DMA overlaps MXU
        kernel = _swiglu_streamed_kernel
        grid = (n_i, n_k)
        in_specs = [
            pl.BlockSpec((tm, d_model), lambda i, k: (i, 0)),                   # x tile
            pl.BlockSpec((1, d_model, dff_blk), lambda i, k: (k, 0, 0)),        # W_u block
            pl.BlockSpec((1, d_model, dff_blk), lambda i, k: (k, 0, 0)),        # W_v block
            pl.BlockSpec((1, 1, dff_blk), lambda i, k: (k, 0, 0)),              # b_u block
            pl.BlockSpec((1, 1, dff_blk), lambda i, k: (k, 0, 0)),              # b_v block
            pl.BlockSpec((1, dff_blk, d_model), lambda i, k: (k, 0, 0)),        # W_out block
            pl.BlockSpec((1, d_model), lambda i, k: (0, 0)),                    # b_out
        ]
        out_specs = pl.BlockSpec((tm, d_model), lambda i, k: (i, 0))
        dims = ("parallel", "arbitrary")

    return pl.pallas_call(
        kernel,
        out_shape=jax.ShapeDtypeStruct((N, d_model), out_dtype),
        grid_spec=pltpu.PrefetchScalarGridSpec(
            num_scalar_prefetch=0,
            grid=grid,
            in_specs=in_specs,
            out_specs=out_specs,
            scratch_shapes=[pltpu.VMEM((tm, d_model), jnp.float32)],   # f32 accumulator
        ),
        compiler_params=pltpu.CompilerParams(
            dimension_semantics=dims,
            vmem_limit_bytes=vmem_limit),
    )


def swiglu_feed_forward(x, w_u, w_v, b_u, b_v, w_o, b_o, *, tm=512, force_mode=None):
    """x: (B, S, d_model); params from prepare_swiglu_params.

    Strategy auto-selection: keep all weights resident (single HBM fetch) when they fit
    this chip's VMEM (v5e/v6e, 128 MiB); otherwise stream d_ff weight blocks over a
    trailing grid axis with a large token tile so MXU work covers the weight DMA (v7x,
    64 MiB/TC). NOTE: d_model should be a multiple of 128 in production for lane-dense
    output stores; small test shapes use full-dim blocks which is always legal.
    """
    B, S, d_model = x.shape
    n_k, _, dff_blk = w_u.shape
    compute_dtype = w_u.dtype
    N = B * S

    # Token tile: multiple of 8 sublanes (>=128 preferred for MXU rows), clamped to N.
    tm = max(8, min(_round_up(tm, 8), _round_up(N, 8)))
    x2d = x.reshape(N, d_model)                     # free; no pad / dtype cast here

    # --- VMEM budgeting ------------------------------------------------------------
    c_isz = jnp.dtype(compute_dtype).itemsize
    x_isz = jnp.dtype(x.dtype).itemsize
    cap = _vmem_capacity_bytes()

    weight_block = (2 * d_model * dff_blk + dff_blk * d_model) * c_isz + 2 * dff_blk * 4
    io_bytes = 2 * tm * d_model * 2 * x_isz                         # dbl-buffered x + out
    acc_bytes = tm * d_model * 4
    tmp_bytes = (3 * tm * dff_blk * 4                               # u, v, h in f32
                 + tm * dff_blk * c_isz + tm * d_model * c_isz)     # bf16 copies of h, x

    resident_total = n_k * weight_block + d_model * 4 + io_bytes + acc_bytes + tmp_bytes
    streamed_total = 2 * weight_block + d_model * 4 + io_bytes + acc_bytes + tmp_bytes

    headroom = 8 << 20
    if force_mode is None:
        mode = "resident" if resident_total + headroom <= cap else "streamed"
    else:
        mode = force_mode
    total = resident_total if mode == "resident" else streamed_total
    vmem_limit = int(max(min(total + headroom, cap - (4 << 20)), 32 << 20))
    # ---------------------------------------------------------------------------------

    call = _build_call(mode, N, d_model, n_k, dff_blk, tm, x.dtype, vmem_limit)
    out2d = call(x2d, w_u, w_v, b_u, b_v, w_o, b_o)
    return out2d.reshape(B, S, d_model)


def reference_swiglu(x, w_in_gate, b_in_gate, w_out, b_out):
    """Pure-JAX f32 reference matching the PyTorch forward."""
    proj = jnp.einsum("bsd,fd->bsf", x, w_in_gate) + b_in_gate
    u, v = jnp.split(proj, 2, axis=-1)
    h = u * (v * jax.nn.sigmoid(v))
    return jnp.einsum("bsf,df->bsd", h, w_out) + b_out


if __name__ == "__main__":
    # Small, module-consistent shapes: batch=2, seq=8, d_model=32, d_ff=64, bias=True, dropout=0.
    B, S, d_model, d_ff = 2, 8, 32, 64
    key = jax.random.PRNGKey(0)
    k_x, k_wig, k_big, k_wo, k_bo = jax.random.split(key, 5)

    x = jax.random.normal(k_x, (B, S, d_model), dtype=jnp.float32)
    # nn.Linear(d_model, 2*d_ff): weight (2*d_ff, d_model), bias (2*d_ff,)
    w_in_gate = jax.random.normal(k_wig, (2 * d_ff, d_model), dtype=jnp.float32) * 0.05
    b_in_gate = jax.random.normal(k_big, (2 * d_ff,), dtype=jnp.float32) * 0.05
    # nn.Linear(d_ff, d_model): weight (d_model, d_ff), bias (d_model,)
    w_out = jax.random.normal(k_wo, (d_model, d_ff), dtype=jnp.float32) * 0.05
    b_out = jax.random.normal(k_bo, (d_model,), dtype=jnp.float32) * 0.05

    # One-time layout prep (outside the hot path).
    params = prepare_swiglu_params(w_in_gate, b_in_gate, w_out, b_out,
                                   compute_dtype=jnp.bfloat16, dff_block=512)

    y_ref = reference_swiglu(x, w_in_gate, b_in_gate, w_out, b_out)

    # Exercise BOTH code paths: resident (v5e/v6e strategy) and streamed (v7x strategy).
    for mode in ("resident", "streamed"):
        y = swiglu_feed_forward(x, *params, force_mode=mode)
        y = jax.block_until_ready(y)
        assert y.shape == (B, S, d_model)
        assert y.dtype == x.dtype
        # bf16 matmul operands with f32 accumulation vs f32 reference.
        assert jnp.allclose(y, y_ref, atol=2e-2, rtol=2e-2), f"mismatch vs reference ({mode})"

    print("KERNEL_OK")
</pallas_src>

<mosaic_0001>
module attributes {stable_mosaic.version = 11 : i64} {
  func.func @_swiglu_resident_kernel(%arg0: i32, %arg1: memref<16x32xf32, #tpu.memory_space<vmem>>, %arg2: memref<1x32x128xbf16, #tpu.memory_space<vmem>>, %arg3: memref<1x32x128xbf16, #tpu.memory_space<vmem>>, %arg4: memref<1x1x128xf32, #tpu.memory_space<vmem>>, %arg5: memref<1x1x128xf32, #tpu.memory_space<vmem>>, %arg6: memref<1x128x32xbf16, #tpu.memory_space<vmem>>, %arg7: memref<1x32xf32, #tpu.memory_space<vmem>>, %arg8: memref<16x32xf32, #tpu.memory_space<vmem>>, %arg9: memref<16x32xf32, #tpu.memory_space<vmem>>) attributes {dimension_semantics = [#tpu.dimension_semantics<parallel>], iteration_bounds = array<i64: 1>, scalar_prefetch = 0 : i64, scratch_operands = 1 : i64, tpu.core_type = #tpu.core_type<tc>, window_params = [{transform_indices = @transform_0, window_bounds = array<i64: 16, 32>}, {pipeline_mode = #tpu.pipeline_mode<synchronous>, transform_indices = @transform_1, window_bounds = array<i64: 1, 32, 128>}, {pipeline_mode = #tpu.pipeline_mode<synchronous>, transform_indices = @transform_2, window_bounds = array<i64: 1, 32, 128>}, {pipeline_mode = #tpu.pipeline_mode<synchronous>, transform_indices = @transform_3, window_bounds = array<i64: 1, 1, 128>}, {pipeline_mode = #tpu.pipeline_mode<synchronous>, transform_indices = @transform_4, window_bounds = array<i64: 1, 1, 128>}, {pipeline_mode = #tpu.pipeline_mode<synchronous>, transform_indices = @transform_5, window_bounds = array<i64: 1, 128, 32>}, {pipeline_mode = #tpu.pipeline_mode<synchronous>, transform_indices = @transform_6, window_bounds = array<i64: 1, 32>}, {transform_indices = @transform_7, window_bounds = array<i64: 16, 32>}]} {
    %c0 = arith.constant 0 : index
    %c0_0 = arith.constant 0 : index
    %0 = vector.load %arg1[%c0, %c0_0] : memref<16x32xf32, #tpu.memory_space<vmem>>, vector<16x32xf32>
    %1 = arith.truncf %0 : vector<16x32xf32> to vector<16x32xbf16>
    %cst = arith.constant 0.000000e+00 : f32
    %2 = vector.broadcast %cst : f32 to vector<16x32xf32>
    %c0_1 = arith.constant 0 : index
    %c0_2 = arith.constant 0 : index
    %3 = vector.load %arg9[%c0_1, %c0_2] : memref<16x32xf32, #tpu.memory_space<vmem>>, vector<16x32xf32>
    tpu.vector_store %arg9[%c0_1, %c0_2], %2 {strides = array<i32>} : memref<16x32xf32, #tpu.memory_space<vmem>>, vector<16x32xf32>,
    %c0_i32 = arith.constant 0 : i32
    %4 = arith.index_cast %c0_i32 : i32 to index
    %c0_3 = arith.constant 0 : index
    %c0_4 = arith.constant 0 : index
    %5 = vector.load %arg2[%4, %c0_3, %c0_4] : memref<1x32x128xbf16, #tpu.memory_space<vmem>>, vector<1x32x128xbf16>
    %6 = vector.shape_cast %5 : vector<1x32x128xbf16> to vector<32x128xbf16>
    %cst_5 = arith.constant dense<0.000000e+00> : vector<16x128xf32>
    %7 = tpu.matmul %1, %6, %cst_5 {dimension_numbers = #tpu.dot_dimension_numbers<[1], [0], [0], [1], [0, 0, 1, 1], [], []>} : vector<16x32xbf16>, vector<32x128xbf16>, vector<16x128xf32> -> vector<16x128xf32>
    %8 = arith.index_cast %c0_i32 : i32 to index
    %c0_6 = arith.constant 0 : index
    %c0_7 = arith.constant 0 : index
    %9 = vector.load %arg4[%8, %c0_6, %c0_7] : memref<1x1x128xf32, #tpu.memory_space<vmem>>, vector<1x1x128xf32>
    %10 = vector.shape_cast %9 : vector<1x1x128xf32> to vector<1x128xf32>
    %11 = vector.broadcast %10 : vector<1x128xf32> to vector<16x128xf32>
    %12 = arith.addf %7, %11 : vector<16x128xf32>
    %13 = arith.index_cast %c0_i32 : i32 to index
    %c0_8 = arith.constant 0 : index
    %c0_9 = arith.constant 0 : index
    %14 = vector.load %arg3[%13, %c0_8, %c0_9] : memref<1x32x128xbf16, #tpu.memory_space<vmem>>, vector<1x32x128xbf16>
    %15 = vector.shape_cast %14 : vector<1x32x128xbf16> to vector<32x128xbf16>
    %cst_10 = arith.constant dense<0.000000e+00> : vector<16x128xf32>
    %16 = tpu.matmul %1, %15, %cst_10 {dimension_numbers = #tpu.dot_dimension_numbers<[1], [0], [0], [1], [0, 0, 1, 1], [], []>} : vector<16x32xbf16>, vector<32x128xbf16>, vector<16x128xf32> -> vector<16x128xf32>
    %17 = arith.index_cast %c0_i32 : i32 to index
    %c0_11 = arith.constant 0 : index
    %c0_12 = arith.constant 0 : index
    %18 = vector.load %arg5[%17, %c0_11, %c0_12] : memref<1x1x128xf32, #tpu.memory_space<vmem>>, vector<1x1x128xf32>
    %19 = vector.shape_cast %18 : vector<1x1x128xf32> to vector<1x128xf32>
    %20 = vector.broadcast %19 : vector<1x128xf32> to vector<16x128xf32>
    %21 = arith.addf %16, %20 : vector<16x128xf32>
    %22 = arith.negf %21 : vector<16x128xf32>
    %23 = math.exp %22 : vector<16x128xf32>
    %cst_13 = arith.constant 1.000000e+00 : f32
    %24 = vector.broadcast %cst_13 : f32 to vector<16x128xf32>
    %25 = arith.addf %24, %23 : vector<16x128xf32>
    %26 = arith.divf %24, %25 : vector<16x128xf32>
    %27 = arith.mulf %21, %26 : vector<16x128xf32>
    %28 = arith.mulf %12, %27 : vector<16x128xf32>
    %c0_14 = arith.constant 0 : index
    %c0_15 = arith.constant 0 : index
    %29 = vector.load %arg9[%c0_14, %c0_15] : memref<16x32xf32, #tpu.memory_space<vmem>>, vector<16x32xf32>
    %30 = arith.truncf %28 : vector<16x128xf32> to vector<16x128xbf16>
    %31 = arith.index_cast %c0_i32 : i32 to index
    %c0_16 = arith.constant 0 : index
    %c0_17 = arith.constant 0 : index
    %32 = vector.load %arg6[%31, %c0_16, %c0_17] : memref<1x128x32xbf16, #tpu.memory_space<vmem>>, vector<1x128x32xbf16>
    %33 = vector.shape_cast %32 : vector<1x128x32xbf16> to vector<128x32xbf16>
    %cst_18 = arith.constant dense<0.000000e+00> : vector<16x32xf32>
    %34 = tpu.matmul %30, %33, %cst_18 {dimension_numbers = #tpu.dot_dimension_numbers<[1], [0], [0], [1], [0, 0, 1, 1], [], []>} : vector<16x128xbf16>, vector<128x32xbf16>, vector<16x32xf32> -> vector<16x32xf32>
    %35 = arith.addf %29, %34 : vector<16x32xf32>
    %c0_19 = arith.constant 0 : index
    %c0_20 = arith.constant 0 : index
    %36 = vector.load %arg9[%c0_19, %c0_20] : memref<16x32xf32, #tpu.memory_space<vmem>>, vector<16x32xf32>
    tpu.vector_store %arg9[%c0_19, %c0_20], %35 {strides = array<i32>} : memref<16x32xf32, #tpu.memory_space<vmem>>, vector<16x32xf32>,
    %c1_i32 = arith.constant 1 : i32
    %c0_21 = arith.constant 0 : index
    %c0_22 = arith.constant 0 : index
    %37 = vector.load %arg9[%c0_21, %c0_22] : memref<16x32xf32, #tpu.memory_space<vmem>>, vector<16x32xf32>
    %c0_23 = arith.constant 0 : index
    %c0_24 = arith.constant 0 : index
    %38 = vector.load %arg7[%c0_23, %c0_24] : memref<1x32xf32, #tpu.memory_space<vmem>>, vector<1x32xf32>
    %39 = vector.broadcast %38 : vector<1x32xf32> to vector<16x32xf32>
    %40 = arith.addf %37, %39 : vector<16x32xf32>
    %c0_25 = arith.constant 0 : index
    %c0_26 = arith.constant 0 : index
    %41 = vector.load %arg8[%c0_25, %c0_26] : memref<16x32xf32, #tpu.memory_space<vmem>>, vector<16x32xf32>
    tpu.vector_store %arg8[%c0_25, %c0_26], %40 {strides = array<i32>} : memref<16x32xf32, #tpu.memory_space<vmem>>, vector<16x32xf32>,
    return
  }
  func.func @transform_0(%arg0: i32) -> (i32, i32) {
    %c0_i32 = arith.constant 0 : i32
    %c0_i32_0 = arith.constant 0 : i32
    return %arg0, %c0_i32 : i32, i32
  }
  func.func @transform_1(%arg0: i32) -> (i32, i32, i32) {
    %c0_i32 = arith.constant 0 : i32
    %c0_i32_0 = arith.constant 0 : i32
    %c0_i32_1 = arith.constant 0 : i32
    %c0_i32_2 = arith.constant 0 : i32
    return %c0_i32, %c0_i32_0, %c0_i32_1 : i32, i32, i32
  }
  func.func @transform_2(%arg0: i32) -> (i32, i32, i32) {
    %c0_i32 = arith.constant 0 : i32
    %c0_i32_0 = arith.constant 0 : i32
    %c0_i32_1 = arith.constant 0 : i32
    %c0_i32_2 = arith.constant 0 : i32
    return %c0_i32, %c0_i32_0, %c0_i32_1 : i32, i32, i32
  }
  func.func @transform_3(%arg0: i32) -> (i32, i32, i32) {
    %c0_i32 = arith.constant 0 : i32
    %c0_i32_0 = arith.constant 0 : i32
    %c0_i32_1 = arith.constant 0 : i32
    %c0_i32_2 = arith.constant 0 : i32
    return %c0_i32, %c0_i32_0, %c0_i32_1 : i32, i32, i32
  }
  func.func @transform_4(%arg0: i32) -> (i32, i32, i32) {
    %c0_i32 = arith.constant 0 : i32
    %c0_i32_0 = arith.constant 0 : i32
    %c0_i32_1 = arith.constant 0 : i32
    %c0_i32_2 = arith.constant 0 : i32
    return %c0_i32, %c0_i32_0, %c0_i32_1 : i32, i32, i32
  }
  func.func @transform_5(%arg0: i32) -> (i32, i32, i32) {
    %c0_i32 = arith.constant 0 : i32
    %c0_i32_0 = arith.constant 0 : i32
    %c0_i32_1 = arith.constant 0 : i32
    %c0_i32_2 = arith.constant 0 : i32
    return %c0_i32, %c0_i32_0, %c0_i32_1 : i32, i32, i32
  }
  func.func @transform_6(%arg0: i32) -> (i32, i32) {
    %c0_i32 = arith.constant 0 : i32
    %c0_i32_0 = arith.constant 0 : i32
    %c0_i32_1 = arith.constant 0 : i32
    return %c0_i32, %c0_i32_0 : i32, i32
  }
  func.func @transform_7(%arg0: i32) -> (i32, i32) {
    %c0_i32 = arith.constant 0 : i32
    %c0_i32_0 = arith.constant 0 : i32
    return %arg0, %c0_i32 : i32, i32
  }
}

</mosaic_0001>

<llo_original>
// kernel: tpu_custom_call.1
$region0: #{tpu_custom_call.1}
  #allocation0 [shape = 'u32[]', space=smem, size = 0x4, offset = 0x4, fixed_abs, tag = 'smem constant byte address 0x4 - core index']
  #allocation1 [shape = 'u32[144,128]{1,0:T(1,128)}', space=vmem, size = 0x12000, scoped, tag = 'internal scratch']
  #allocation2 [shape = 'f32[16,32]{1,0:T(8,128)}', space=vmem, size = 0x2000, scoped, tag = 'scratch operand']
  %s0 = inlined_call_operand.vmem [shape: f32[16,32], index: 0, kind: input, shape index: {}]
  %s1 = inlined_call_operand.vmem [shape: bf16[1,32,128], index: 1, kind: input, shape index: {}]
  %s2 = inlined_call_operand.vmem [shape: bf16[1,32,128], index: 2, kind: input, shape index: {}]
  %s3 = inlined_call_operand.vmem [shape: f32[1,1,128], index: 3, kind: input, shape index: {}]
  %s4 = inlined_call_operand.vmem [shape: f32[1,1,128], index: 4, kind: input, shape index: {}]
  %s5 = inlined_call_operand.vmem [shape: bf16[1,128,32], index: 5, kind: input, shape index: {}]
  %s6 = inlined_call_operand.vmem [shape: f32[1,32], index: 6, kind: input, shape index: {}]
  %s7 = inlined_call_operand.hbm [shape: f32[16,32], index: 7, kind: output, shape index: {}]
  %s8 = sld [smem:[#allocation0]]
  $region38: #{tpu_custom_call.1} parent=0
    _
  %s10 = ssub.s32 1, %s8
  %s11 = scalar_select 0, %s10, %s8
  $region1: #{tpu_custom_call.1} parent=0
    #allocation3 [shape = 'u8[8192]{0}', space=vmem, size = 0x2000, scoped, tag = 'output window, operand 0, single buffered']
    #allocation4 [shape = 's32[1]{0}', space=sflag, size = 0x4, scoped, tag = 'scoped memory for tpu_custom_call.1']
    %12 = vsyncpa [#allocation4], 0
    // Predicated region
    $region2: #{tpu_custom_call.1} parent=1 // pred_check
      _
    $region3: #{tpu_custom_call.1} parent=1 // pred_check_branch
      %14 = sbr.rel (0) target = $region5
    $region4: #{tpu_custom_call.1} parent=1 // pred_region
      _
    $region5: #{tpu_custom_call.1} parent=1 // pred_fallthru
      _
    // Predicated region
    $region6: #{tpu_custom_call.1} parent=1 // pred_check
      _
    $region7: #{tpu_custom_call.1} parent=1 // pred_check_branch
      %16 = sbr.rel (0) target = $region9
    $region8: #{tpu_custom_call.1} parent=1 // pred_region
      _
    $region9: #{tpu_custom_call.1} parent=1 // pred_fallthru
      _
    // Predicated region
    $region10: #{tpu_custom_call.1} parent=1 // pred_check
      _
    $region11: #{tpu_custom_call.1} parent=1 // pred_check_branch
      %18 = sbr.rel (0) target = $region13
    $region12: #{tpu_custom_call.1} parent=1 // pred_region
      _
    $region13: #{tpu_custom_call.1} parent=1 // pred_fallthru
      _
    // Predicated region
    $region14: #{tpu_custom_call.1} parent=1 // pred_check
      _
    $region15: #{tpu_custom_call.1} parent=1 // pred_check_branch
      %20 = sbr.rel (0) target = $region17
    $region16: #{tpu_custom_call.1} parent=1 // pred_region
      _
    $region17: #{tpu_custom_call.1} parent=1 // pred_fallthru
      _
    // Predicated region
    $region18: #{tpu_custom_call.1} parent=1 // pred_check
      _
    $region19: #{tpu_custom_call.1} parent=1 // pred_check_branch
      %22 = sbr.rel (0) target = $region21
    $region20: #{tpu_custom_call.1} parent=1 // pred_region
      _
    $region21: #{tpu_custom_call.1} parent=1 // pred_fallthru
      _
    // Predicated region
    $region22: #{tpu_custom_call.1} parent=1 // pred_check
      _
    $region23: #{tpu_custom_call.1} parent=1 // pred_check_branch
      %24 = sbr.rel (0) target = $region25
    $region24: #{tpu_custom_call.1} parent=1 // pred_region
      _
    $region25: #{tpu_custom_call.1} parent=1 // pred_fallthru
      _
    // Predicated region
    $region26: #{tpu_custom_call.1} parent=1 // pred_check
      _
    $region27: #{tpu_custom_call.1} parent=1 // pred_check_branch
      %26 = sbr.rel (0) target = $region29
    $region28: #{tpu_custom_call.1} parent=1 // pred_region
      _
    $region29: #{tpu_custom_call.1} parent=1 // pred_fallthru
      _
    %v28 = vld [vmem:[%s0] sm:$0xff]
    %v29 = vld [vmem:[%s0 + $0x8] sm:$0xff]
    %v30 = vpack.c.bf16 %v29, %v28
    %vm31 = vcmask 261120
    %32 = vst.msk [vmem:[#allocation2] sm:$0xff] %vm31, 0.0
    %33 = vst.msk [vmem:[#allocation2 + $0x8] sm:$0xff] %vm31, 0.0
    %v34 = vld [vmem:[%s1] sm:$0xf]
    %v35 = vld [vmem:[%s1 + $0x4] sm:$0xf]
    %v36 = vld [vmem:[%s1 + $0x8] sm:$0xf]
    %v37 = vld [vmem:[%s1 + $0xc] sm:$0xf]
    %v38 = vld [vmem:[%s3] sm:$0x1]
    %v40 = vlaneseq
    %v41 = vshrl.u32 %v40, 7
    %v42 = vsub.s32 0, %v41
    %v43 = vrot.slane %v38, %v42
    %v49 = vunpack.c.l.b16 %v34
    %v50 = vunpack.c.l.b16 %v35
    %v51 = vunpack.c.l.b16 %v36
    %v52 = vunpack.c.l.b16 %v37
    %v53 = vpack.c.b16 %v50, %v49
    %v54 = vpack.c.b16 %v52, %v51
    %v58 = vsel %vm31, %v30, 0
    %60 = vmatprep.subr.bf16.mxu0 0
    %61 = vmatpush1.bf16.msra.mxu0 %v53
    %62 = vmatprep.subr.bf16.mxu0 0
    %63 = vmatpush1.bf16.msra.mxu0 %v54
    %64 = vmatprep.subr.bf16.mxu0 0
    %65 = vmatpush1.bf16.msra.mxu0 0
    %66 = vmatprep.subr.bf16.mxu0 0
    %67 = vmatpush1.bf16.msra.mxu0 0
    %68 = vmatprep.subr.bf16.mxu0 0
    %69 = vmatpush1.bf16.msra.mxu0 0
    %70 = vmatprep.subr.bf16.mxu0 0
    %71 = vmatpush1.bf16.msra.mxu0 0
    %72 = vmatprep.subr.bf16.mxu0 0
    %73 = vmatpush1.bf16.msra.mxu0 0
    %74 = vmatprep.subr.bf16.mxu0 0
    %75 = vmatpush1.bf16.msra.mxu0 0
    %76 = vmatprep.subr.bf16.mxu0 0
    %77 = vmatpush1.bf16.msra.mxu0 0
    %78 = vmatprep.subr.bf16.mxu0 0
    %79 = vmatpush1.bf16.msra.mxu0 0
    %80 = vmatprep.subr.bf16.mxu0 0
    %81 = vmatpush1.bf16.msra.mxu0 0
    %82 = vmatprep.subr.bf16.mxu0 0
    %83 = vmatpush1.bf16.msra.mxu0 0
    %84 = vmatprep.subr.bf16.mxu0 0
    %85 = vmatpush1.bf16.msra.mxu0 0
    %86 = vmatprep.subr.bf16.mxu0 0
    %87 = vmatpush1.bf16.msra.mxu0 0
    %88 = vmatprep.subr.bf16.mxu0 0
    %89 = vmatpush1.bf16.msra.mxu0 0
    %90 = vmatprep.subr.bf16.mxu0 0
    %91 = vmatpush1.bf16.msra.mxu0 0
    %92 = vmatprep.mubr.bf16.mxu0 0
    %93 = vmatmul.mubr.bf16.gmra.mrb[0].mxu0 %v58
    %v94 = vpop.f32.mrb[0].mxu0
    %v95 = vadd.f32 %v43, %v94
    %v96 = vpop.f32.mrb[0].mxu0
    %v97 = vpop.f32.mrb[0].mxu0
    %v98 = vadd.f32 %v43, %v97
    %v99 = vpop.f32.mrb[0].mxu0
    %100 = vdwg.mxu0
    %v101 = vld [vmem:[%s2] sm:$0xf]
    %v102 = vld [vmem:[%s2 + $0x4] sm:$0xf]
    %v103 = vld [vmem:[%s2 + $0x8] sm:$0xf]
    %v104 = vld [vmem:[%s2 + $0xc] sm:$0xf]
    %v105 = vld [vmem:[%s4] sm:$0x1]
    %v107 = vlaneseq
    %v108 = vshrl.u32 %v107, 7
    %v109 = vsub.s32 0, %v108
    %v110 = vrot.slane %v105, %v109
    %v116 = vunpack.c.l.b16 %v101
    %v117 = vunpack.c.l.b16 %v102
    %v118 = vunpack.c.l.b16 %v103
    %v119 = vunpack.c.l.b16 %v104
    %v120 = vpack.c.b16 %v117, %v116
    %v121 = vpack.c.b16 %v119, %v118
    %124 = vmatprep.subr.bf16.mxu0 0
    %125 = vmatpush1.bf16.msra.mxu0 %v120
    %126 = vmatprep.subr.bf16.mxu0 0
    %127 = vmatpush1.bf16.msra.mxu0 %v121
    %128 = vmatprep.subr.bf16.mxu0 0
    %129 = vmatpush1.bf16.msra.mxu0 0
    %130 = vmatprep.subr.bf16.mxu0 0
    %131 = vmatpush1.bf16.msra.mxu0 0
    %132 = vmatprep.subr.bf16.mxu0 0
    %133 = vmatpush1.bf16.msra.mxu0 0
    %134 = vmatprep.subr.bf16.mxu0 0
    %135 = vmatpush1.bf16.msra.mxu0 0
    %136 = vmatprep.subr.bf16.mxu0 0
    %137 = vmatpush1.bf16.msra.mxu0 0
    %138 = vmatprep.subr.bf16.mxu0 0
    %139 = vmatpush1.bf16.msra.mxu0 0
    %140 = vmatprep.subr.bf16.mxu0 0
    %141 = vmatpush1.bf16.msra.mxu0 0
    %142 = vmatprep.subr.bf16.mxu0 0
    %143 = vmatpush1.bf16.msra.mxu0 0
    %144 = vmatprep.subr.bf16.mxu0 0
    %145 = vmatpush1.bf16.msra.mxu0 0
    %146 = vmatprep.subr.bf16.mxu0 0
    %147 = vmatpush1.bf16.msra.mxu0 0
    %148 = vmatprep.subr.bf16.mxu0 0
    %149 = vmatpush1.bf16.msra.mxu0 0
    %150 = vmatprep.subr.bf16.mxu0 0
    %151 = vmatpush1.bf16.msra.mxu0 0
    %152 = vmatprep.subr.bf16.mxu0 0
    %153 = vmatpush1.bf16.msra.mxu0 0
    %154 = vmatprep.subr.bf16.mxu0 0
    %155 = vmatpush1.bf16.msra.mxu0 0
    %156 = vmatprep.mubr.bf16.mxu0 0
    %157 = vmatmul.mubr.bf16.gmra.mrb[0].mxu0 %v58
    %v158 = vpop.f32.mrb[0].mxu0
    %v159 = vadd.f32 %v110, %v158
    %v160 = vpop.f32.mrb[0].mxu0
    %v161 = vpop.f32.mrb[0].mxu0
    %v162 = vadd.f32 %v110, %v161
    %v163 = vpop.f32.mrb[0].mxu0
    %164 = vdwg.mxu0
    %v165 = vxor.u32 %v159, 2147483648
    %v166 = vxor.u32 %v162, 2147483648
    %v167 = vmul.f32 %v165, 1.442695
    %v168 = vpow.pop %v167
    %v169 = vmul.f32 %v166, 1.442695
    %v170 = vpow.pop %v169
    %v171 = vadd.f32 %v168, 1.0
    %v172 = vadd.f32 %v170, 1.0
    %v173 = vrcp.pop %v171
    %v174 = vmul.f32 1.0, %v173
    %v175 = vrcp.pop %v172
    %v176 = vmul.f32 1.0, %v175
    %v177 = vmul.f32 %v159, %v174
    %v178 = vmul.f32 %v162, %v176
    %v179 = vmul.f32 %v95, %v177
    %v180 = vmul.f32 %v98, %v178
    %v181 = vld [vmem:[#allocation2] sm:$0xff]
    %v182 = vld [vmem:[#allocation2 + $0x8] sm:$0xff]
    %v183 = vpack.c.bf16 %v180, %v179
    %v184 = vld [vmem:[%s5] sm:$0xf]
    %v185 = vld [vmem:[%s5 + $0x4] sm:$0xf]
    %v186 = vld [vmem:[%s5 + $0x8] sm:$0xf]
    %v187 = vld [vmem:[%s5 + $0xc] sm:$0xf]
    %v188 = vld [vmem:[%s5 + $0x10] sm:$0xf]
    %v189 = vld [vmem:[%s5 + $0x14] sm:$0xf]
    %v190 = vld [vmem:[%s5 + $0x18] sm:$0xf]
    %v191 = vld [vmem:[%s5 + $0x1c] sm:$0xf]
    %v192 = vld [vmem:[%s5 + $0x20] sm:$0xf]
    %v193 = vld [vmem:[%s5 + $0x24] sm:$0xf]
    %v194 = vld [vmem:[%s5 + $0x28] sm:$0xf]
    %v195 = vld [vmem:[%s5 + $0x2c] sm:$0xf]
    %v196 = vld [vmem:[%s5 + $0x30] sm:$0xf]
    %v197 = vld [vmem:[%s5 + $0x34] sm:$0xf]
    %v198 = vld [vmem:[%s5 + $0x38] sm:$0xf]
    %v199 = vld [vmem:[%s5 + $0x3c] sm:$0xf]
    %v216 = vunpack.c.l.b16 %v184
    %v217 = vunpack.c.l.b16 %v185
    %v218 = vunpack.c.l.b16 %v186
    %v219 = vunpack.c.l.b16 %v187
    %v220 = vunpack.c.l.b16 %v188
    %v221 = vunpack.c.l.b16 %v189
    %v222 = vunpack.c.l.b16 %v190
    %v223 = vunpack.c.l.b16 %v191
    %v224 = vunpack.c.l.b16 %v192
    %v225 = vunpack.c.l.b16 %v193
    %v226 = vunpack.c.l.b16 %v194
    %v227 = vunpack.c.l.b16 %v195
    %v228 = vunpack.c.l.b16 %v196
    %v229 = vunpack.c.l.b16 %v197
    %v230 = vunpack.c.l.b16 %v198
    %v231 = vunpack.c.l.b16 %v199
    %v232 = vpack.c.b16 %v217, %v216
    %v233 = vpack.c.b16 %v219, %v218
    %v234 = vpack.c.b16 %v221, %v220
    %v235 = vpack.c.b16 %v223, %v222
    %v236 = vpack.c.b16 %v225, %v224
    %v237 = vpack.c.b16 %v227, %v226
    %v238 = vpack.c.b16 %v229, %v228
    %v239 = vpack.c.b16 %v231, %v230
    %248 = vmatprep.subr.bf16.mxu0 0
    %249 = vmatpush1.bf16.msra.mxu0 %v232
    %250 = vmatprep.subr.bf16.mxu0 0
    %251 = vmatpush1.bf16.msra.mxu0 %v233
    %252 = vmatprep.subr.bf16.mxu0 0
    %253 = vmatpush1.bf16.msra.mxu0 %v234
    %254 = vmatprep.subr.bf16.mxu0 0
    %255 = vmatpush1.bf16.msra.mxu0 %v235
    %256 = vmatprep.subr.bf16.mxu0 0
    %257 = vmatpush1.bf16.msra.mxu0 %v236
    %258 = vmatprep.subr.bf16.mxu0 0
    %259 = vmatpush1.bf16.msra.mxu0 %v237
    %260 = vmatprep.subr.bf16.mxu0 0
    %261 = vmatpush1.bf16.msra.mxu0 %v238
    %262 = vmatprep.subr.bf16.mxu0 0
    %263 = vmatpush1.bf16.msra.mxu0 %v239
    %264 = vmatprep.subr.bf16.mxu0 0
    %265 = vmatpush1.bf16.msra.mxu0 0
    %266 = vmatprep.subr.bf16.mxu0 0
    %267 = vmatpush1.bf16.msra.mxu0 0
    %268 = vmatprep.subr.bf16.mxu0 0
    %269 = vmatpush1.bf16.msra.mxu0 0
    %270 = vmatprep.subr.bf16.mxu0 0
    %271 = vmatpush1.bf16.msra.mxu0 0
    %272 = vmatprep.subr.bf16.mxu0 0
    %273 = vmatpush1.bf16.msra.mxu0 0
    %274 = vmatprep.subr.bf16.mxu0 0
    %275 = vmatpush1.bf16.msra.mxu0 0
    %276 = vmatprep.subr.bf16.mxu0 0
    %277 = vmatpush1.bf16.msra.mxu0 0
    %278 = vmatprep.subr.bf16.mxu0 0
    %279 = vmatpush1.bf16.msra.mxu0 0
    %280 = vmatprep.mubr.bf16.mxu0 0
    %281 = vmatmul.mubr.bf16.gmra.mrb[0].mxu0 %v183
    %v282 = vpop.f32.mrb[0].mxu0
    %v283 = vadd.f32 0.0, %v282
    %v284 = vpop.f32.mrb[0].mxu0
    %v285 = vpop.f32.mrb[0].mxu0
    %v286 = vadd.f32 0.0, %v285
    %v287 = vpop.f32.mrb[0].mxu0
    %288 = vdwg.mxu0
    %v289 = vadd.f32 %v181, %v283
    %v290 = vadd.f32 %v182, %v286
    %291 = vst.msk [vmem:[#allocation2] sm:$0xff] %vm31, %v289
    %292 = vst.msk [vmem:[#allocation2 + $0x8] sm:$0xff] %vm31, %v290
    %v293 = vld [vmem:[#allocation2] sm:$0xff]
    %v294 = vld [vmem:[#allocation2 + $0x8] sm:$0xff]
    %v295 = vld [vmem:[%s6] sm:$0x1]
    %v297 = vlaneseq
    %v298 = vshrl.u32 %v297, 7
    %v299 = vsub.s32 0, %v298
    %v300 = vrot.slane %v295, %v299
    %v302 = vadd.f32 %v293, %v300
    %v303 = vadd.f32 %v294, %v300
    %304 = vst.msk [vmem:[#allocation3] sm:$0xff] %vm31, %v302
    %305 = vst.msk [vmem:[#allocation3 + $0x8] sm:$0xff] %vm31, %v303
    // Predicated region
    $region30: #{tpu_custom_call.1} parent=1 // pred_check
      _
    $region31: #{tpu_custom_call.1} parent=1 // pred_check_branch
      %307 = sbr.rel (0) target = $region33
    $region32: #{tpu_custom_call.1} parent=1 // pred_region
      %s309 = ssub.s32 256, 256
      %310 = vsyncadd [#allocation4], %s309
      %s311 = sshll.u32 [#allocation3], 4
      %s312 = int_to_ptr.vmem [resolvable:$true] %s311
      %317 = dma.vmem_to_hbm [thread:$0]  %s312, 256, %s7, [#allocation4], 128, 128, 8
    $region33: #{tpu_custom_call.1} parent=1 // pred_fallthru
      _
    // Predicated region
    $region34: #{tpu_custom_call.1} parent=1 // pred_check
      _
    $region35: #{tpu_custom_call.1} parent=1 // pred_check_branch
      %319 = sbr.rel (0) target = $region37
    $region36: #{tpu_custom_call.1} parent=1 // pred_region
      %320 = dma.done [#allocation4], 256
    $region37: #{tpu_custom_call.1} parent=1 // pred_fallthru
      _
    %321 = vsyncpa [#allocation4], 1

</llo_original>
